<compile_context>
chip_gen: v7x
topology: tpu7x:2x2x1
jax: 0.10.0
libtpu: 0.0.40
codegen_flags: <defaults>
</compile_context>

<pallas_src>
import functools

import jax
import jax.numpy as jnp
from jax.experimental import pallas as pl
from jax.experimental.pallas import tpu as pltpu

_EPS = 1e-6  # torch.nn.functional.pairwise_distance default eps


def _round_up(x, m):
    return (x + m - 1) // m * m


def _contrastive_loss_kernel(o1_ref, o2_ref, lab_ref, part_ref,
                             d2_ref, acc_ref, *,
                             margin, batch, feat, tile_b, tile_d,
                             tiles_per_core, d_tiles, mask_cols):
    c = pl.program_id(0)          # core-split axis
    t = pl.program_id(1)          # batch-tile axis (reduction)
    k = pl.program_id(2)          # feature-tile axis (reduction)

    @pl.when((t == 0) & (k == 0))
    def _init_acc():
        acc_ref[...] = jnp.zeros_like(acc_ref)

    @pl.when(k == 0)
    def _init_d2():
        d2_ref[...] = jnp.zeros_like(d2_ref)

    o1 = o1_ref[...].astype(jnp.float32)     # (TB, TD)
    o2 = o2_ref[...].astype(jnp.float32)     # (TB, TD)

    # pairwise_distance: ||x1 - x2 + eps||_2 along the feature axis (eps per element).
    diff = o1 - o2 + _EPS
    sq = diff * diff
    if mask_cols:
        cols = k * tile_d + jax.lax.broadcasted_iota(jnp.int32, (tile_b, tile_d), 1)
        sq = jnp.where(cols < feat, sq, 0.0)
    d2_ref[...] += jnp.sum(sq, axis=-1, keepdims=True)      # (TB, 1)

    @pl.when(k == d_tiles - 1)
    def _row_math():
        lab = lab_ref[...].astype(jnp.float32)               # (TB, 1)
        d2 = d2_ref[...]
        d = jnp.sqrt(d2)                                     # EUP
        hinge = jnp.maximum(margin - d, 0.0)                 # clamp(margin - d, min=0)
        per_sample = lab * d2 + (1.0 - lab) * (hinge * hinge)

        # Mask rows belonging to the ragged last block / core overshoot so they
        # don't skew the mean (garbage rows may be NaN; jnp.where is a select).
        row0 = (c * tiles_per_core + t) * tile_b
        rows = row0 + jax.lax.broadcasted_iota(jnp.int32, (tile_b, 1), 0)
        per_sample = jnp.where(rows < batch, per_sample, 0.0)

        acc_ref[...] += per_sample                           # wide (TB,1) accumulator

    @pl.when((t == tiles_per_core - 1) & (k == d_tiles - 1))
    def _finalize():
        part_ref[...] = jnp.sum(acc_ref[...]).reshape(1, 1, 1)


def contrastive_loss(output1, output2, label, margin=1.0):
    """output1, output2: (B, D); label: (B,). Returns scalar f32 loss."""
    B, D = output1.shape
    itemsize = jnp.dtype(output1.dtype).itemsize
    packing = 8 * max(1, 4 // itemsize)       # sublane packing: 8 f32, 16 bf16, 32 int8

    try:
        kind = jax.devices()[0].device_kind.lower()
    except Exception:
        kind = ""
    is_v7 = "v7" in kind

    if is_v7:
        budget = 36 * 1024 * 1024             # working-set budget (64 MiB physical VMEM)
        vmem_limit = 44 * 1024 * 1024
        max_cores = 2
    else:
        budget = 72 * 1024 * 1024             # 128 MiB physical VMEM on v5e / v6e
        vmem_limit = 96 * 1024 * 1024
        max_cores = 1

    # Per-row VMEM footprint, counting lane padding of (tile_b, 1) f32 buffers.
    lane_pad = 128 * 4

    def row_bytes(td):
        return (4 * td * itemsize             # o1, o2 double-buffered input blocks
                + 3 * td * 4                  # f32 temporaries (upcast, diff, diff^2)
                + 2 * lane_pad                # label block, double-buffered, lane padded
                + 2 * lane_pad)               # d2 + acc scratch, lane padded

    if packing * row_bytes(D) <= budget:
        tile_d, d_tiles = D, 1                # common case: full feature dim per block
    else:
        # Very wide embeddings: tile the feature axis (multiple of 128 lanes).
        per_row = max(budget // packing - 4 * lane_pad, 128 * (4 * itemsize + 12))
        tile_d = max(128, per_row // (4 * itemsize + 12) // 128 * 128)
        tile_d = min(tile_d, _round_up(D, 128))
        d_tiles = pl.cdiv(D, tile_d)
    mask_cols = (tile_d * d_tiles != D)

    tile_b = max(packing, budget // row_bytes(tile_d) // packing * packing)
    tile_b = min(tile_b, _round_up(B, packing))

    total_tiles = pl.cdiv(B, tile_b)
    num_cores = max_cores if total_tiles >= max_cores else 1
    tiles_per_core = pl.cdiv(total_tiles, num_cores)
    last_block = total_tiles - 1

    lab2d = label.reshape(B, 1).astype(jnp.float32)

    kernel = functools.partial(
        _contrastive_loss_kernel,
        margin=float(margin), batch=B, feat=D,
        tile_b=tile_b, tile_d=tile_d,
        tiles_per_core=tiles_per_core, d_tiles=d_tiles, mask_cols=mask_cols)

    # Clamp the row-block index so a 2-core split with an odd tile count never
    # issues an out-of-bounds DMA; the row mask zeroes any re-read rows.
    def io_map(c, t, k):
        return (jnp.minimum(c * tiles_per_core + t, last_block), k)

    def lab_map(c, t, k):
        return (jnp.minimum(c * tiles_per_core + t, last_block), 0)

    if is_v7 and num_cores == 2:
        dim_sem = (pltpu.CORE_PARALLEL, pltpu.ARBITRARY, pltpu.ARBITRARY)
    else:
        dim_sem = ("arbitrary", "arbitrary", "arbitrary")

    cost = pl.CostEstimate(
        flops=4 * B * D + 10 * B,
        transcendentals=B,
        bytes_accessed=2 * B * D * itemsize + B * 4 + num_cores * 4,
    )

    partials = pl.pallas_call(
        kernel,
        out_shape=jax.ShapeDtypeStruct((num_cores, 1, 1), jnp.float32),
        grid=(num_cores, tiles_per_core, d_tiles),
        in_specs=[
            pl.BlockSpec((tile_b, tile_d), io_map),
            pl.BlockSpec((tile_b, tile_d), io_map),
            pl.BlockSpec((tile_b, 1), lab_map),
        ],
        out_specs=pl.BlockSpec((1, 1, 1), lambda c, t, k: (c, 0, 0)),
        scratch_shapes=[
            pltpu.VMEM((tile_b, 1), jnp.float32),   # per-row distance^2 accumulator
            pltpu.VMEM((tile_b, 1), jnp.float32),   # per-row loss accumulator
        ],
        compiler_params=pltpu.CompilerParams(
            dimension_semantics=dim_sem,
            vmem_limit_bytes=int(vmem_limit)),
        cost_estimate=cost,
    )(output1, output2, lab2d)

    # Single divide-by-B; per-core partials combined with a trivial sum.
    return jnp.sum(partials) / B


def _reference(output1, output2, label, margin=1.0):
    # Pure-JAX reference matching torch semantics, for sanity checking.
    diff = output1.astype(jnp.float32) - output2.astype(jnp.float32) + _EPS
    d2 = jnp.sum(diff * diff, axis=-1)
    d = jnp.sqrt(d2)
    hinge = jnp.maximum(margin - d, 0.0)
    return jnp.mean(label * d2 + (1.0 - label) * hinge * hinge)


if __name__ == "__main__":
    key = jax.random.PRNGKey(0)
    k1, k2, k3 = jax.random.split(key, 3)

    B, D = 8, 32
    output1 = jax.random.normal(k1, (B, D), dtype=jnp.float32)
    output2 = jax.random.normal(k2, (B, D), dtype=jnp.float32)
    label = jax.random.bernoulli(k3, 0.5, (B,)).astype(jnp.float32)

    loss = contrastive_loss(output1, output2, label, margin=1.0)
    loss = jax.block_until_ready(loss)

    ref = _reference(output1, output2, label, margin=1.0)
    assert jnp.allclose(loss, ref, rtol=1e-5, atol=1e-5), (loss, ref)

    print("KERNEL_OK")
</pallas_src>

<mosaic_0001>
module attributes {stable_mosaic.version = 11 : i64} {
  func.func @_contrastive_loss_kernel(%arg0: i32, %arg1: i32, %arg2: i32, %arg3: memref<8x32xf32, #tpu.memory_space<vmem>>, %arg4: memref<8x32xf32, #tpu.memory_space<vmem>>, %arg5: memref<8x1xf32, #tpu.memory_space<vmem>>, %arg6: memref<1x1x1xf32, #tpu.memory_space<vmem>>, %arg7: memref<8x1xf32, #tpu.memory_space<vmem>>, %arg8: memref<8x1xf32, #tpu.memory_space<vmem>>) attributes {dimension_semantics = [#tpu.dimension_semantics<arbitrary>, #tpu.dimension_semantics<arbitrary>, #tpu.dimension_semantics<arbitrary>], iteration_bounds = array<i64: 1, 1, 1>, scalar_prefetch = 0 : i64, scratch_operands = 2 : i64, tpu.core_type = #tpu.core_type<tc>, window_params = [{transform_indices = @transform_0, window_bounds = array<i64: 8, 32>}, {transform_indices = @transform_1, window_bounds = array<i64: 8, 32>}, {transform_indices = @transform_2, window_bounds = array<i64: 8, 1>}, {transform_indices = @transform_3, window_bounds = array<i64: 1, 1, 1>}]} {
    %c0_i32 = arith.constant 0 : i32
    %0 = arith.cmpi eq, %arg1, %c0_i32 : i32
    %c0_i32_0 = arith.constant 0 : i32
    %1 = arith.cmpi eq, %arg2, %c0_i32_0 : i32
    %2 = arith.andi %0, %1 : i1
    %3 = arith.extui %2 : i1 to i32
    %c0_i32_1 = arith.constant 0 : i32
    %4 = arith.cmpi ne, %3, %c0_i32_1 : i32
    scf.if %4 {
      %cst_17 = arith.constant 0.000000e+00 : f32
      %27 = vector.broadcast %cst_17 : f32 to vector<8x1xf32>
      %c0_18 = arith.constant 0 : index
      %c0_19 = arith.constant 0 : index
      %28 = vector.load %arg8[%c0_18, %c0_19] : memref<8x1xf32, #tpu.memory_space<vmem>>, vector<8x1xf32>
      tpu.vector_store %arg8[%c0_18, %c0_19], %27 {strides = array<i32>} : memref<8x1xf32, #tpu.memory_space<vmem>>, vector<8x1xf32>,
    } else {
    }
    %c0_i32_2 = arith.constant 0 : i32
    %5 = arith.cmpi eq, %arg2, %c0_i32_2 : i32
    %6 = arith.extui %5 : i1 to i32
    %c0_i32_3 = arith.constant 0 : i32
    %7 = arith.cmpi ne, %6, %c0_i32_3 : i32
    scf.if %7 {
      %cst_17 = arith.constant 0.000000e+00 : f32
      %27 = vector.broadcast %cst_17 : f32 to vector<8x1xf32>
      %c0_18 = arith.constant 0 : index
      %c0_19 = arith.constant 0 : index
      %28 = vector.load %arg7[%c0_18, %c0_19] : memref<8x1xf32, #tpu.memory_space<vmem>>, vector<8x1xf32>
      tpu.vector_store %arg7[%c0_18, %c0_19], %27 {strides = array<i32>} : memref<8x1xf32, #tpu.memory_space<vmem>>, vector<8x1xf32>,
    } else {
    }
    %c0 = arith.constant 0 : index
    %c0_4 = arith.constant 0 : index
    %8 = vector.load %arg3[%c0, %c0_4] : memref<8x32xf32, #tpu.memory_space<vmem>>, vector<8x32xf32>
    %c0_5 = arith.constant 0 : index
    %c0_6 = arith.constant 0 : index
    %9 = vector.load %arg4[%c0_5, %c0_6] : memref<8x32xf32, #tpu.memory_space<vmem>>, vector<8x32xf32>
    %10 = arith.subf %8, %9 : vector<8x32xf32>
    %cst = arith.constant 9.99999997E-7 : f32
    %11 = vector.broadcast %cst : f32 to vector<8x32xf32>
    %12 = arith.addf %10, %11 : vector<8x32xf32>
    %13 = arith.mulf %12, %12 : vector<8x32xf32>
    %c0_7 = arith.constant 0 : index
    %c0_8 = arith.constant 0 : index
    %14 = vector.load %arg7[%c0_7, %c0_8] : memref<8x1xf32, #tpu.memory_space<vmem>>, vector<8x1xf32>
    %cst_9 = arith.constant dense<0.000000e+00> : vector<8xf32>
    %15 = vector.multi_reduction <add>, %13, %cst_9 [1] : vector<8x32xf32> to vector<8xf32>
    %16 = vector.shape_cast %15 : vector<8xf32> to vector<8x1xf32>
    %17 = arith.addf %14, %16 : vector<8x1xf32>
    %c0_10 = arith.constant 0 : index
    %c0_11 = arith.constant 0 : index
    %18 = vector.load %arg7[%c0_10, %c0_11] : memref<8x1xf32, #tpu.memory_space<vmem>>, vector<8x1xf32>
    tpu.vector_store %arg7[%c0_10, %c0_11], %17 {strides = array<i32>} : memref<8x1xf32, #tpu.memory_space<vmem>>, vector<8x1xf32>,
    %c0_i32_12 = arith.constant 0 : i32
    %19 = arith.cmpi eq, %arg2, %c0_i32_12 : i32
    %20 = arith.extui %19 : i1 to i32
    %c0_i32_13 = arith.constant 0 : i32
    %21 = arith.cmpi ne, %20, %c0_i32_13 : i32
    scf.if %21 {
      %c0_17 = arith.constant 0 : index
      %c0_18 = arith.constant 0 : index
      %27 = vector.load %arg5[%c0_17, %c0_18] : memref<8x1xf32, #tpu.memory_space<vmem>>, vector<8x1xf32>
      %c0_19 = arith.constant 0 : index
      %c0_20 = arith.constant 0 : index
      %28 = vector.load %arg7[%c0_19, %c0_20] : memref<8x1xf32, #tpu.memory_space<vmem>>, vector<8x1xf32>
      %29 = math.sqrt %28 : vector<8x1xf32>
      %cst_21 = arith.constant 1.000000e+00 : f32
      %30 = vector.broadcast %cst_21 : f32 to vector<8x1xf32>
      %31 = arith.subf %30, %29 : vector<8x1xf32>
      %cst_22 = arith.constant 0.000000e+00 : f32
      %32 = vector.broadcast %cst_22 : f32 to vector<8x1xf32>
      %33 = arith.maximumf %31, %32 : vector<8x1xf32>
      %34 = arith.mulf %27, %28 : vector<8x1xf32>
      %cst_23 = arith.constant 1.000000e+00 : f32
      %35 = vector.broadcast %cst_23 : f32 to vector<8x1xf32>
      %36 = arith.subf %35, %27 : vector<8x1xf32>
      %37 = arith.mulf %33, %33 : vector<8x1xf32>
      %38 = arith.mulf %36, %37 : vector<8x1xf32>
      %39 = arith.addf %34, %38 : vector<8x1xf32>
      %c1_i32 = arith.constant 1 : i32
      %40 = arith.muli %arg0, %c1_i32 : i32
      %41 = arith.addi %40, %arg1 : i32
      %c8_i32 = arith.constant 8 : i32
      %42 = arith.muli %41, %c8_i32 : i32
      %43 = tpu.iota {dimensions = array<i32: 0>} : vector<8x1xi32>
      %44 = vector.broadcast %42 : i32 to vector<8x1xi32>
      %45 = arith.addi %44, %43 : vector<8x1xi32>
      %c8_i32_24 = arith.constant 8 : i32
      %46 = vector.broadcast %c8_i32_24 : i32 to vector<8x1xi32>
      %47 = arith.cmpi slt, %45, %46 : vector<8x1xi32>
      %cst_25 = arith.constant 0.000000e+00 : f32
      %48 = vector.broadcast %cst_25 : f32 to vector<8x1xf32>
      %49 = arith.select %47, %39, %48 : vector<8x1xi1>, vector<8x1xf32>
      %c0_26 = arith.constant 0 : index
      %c0_27 = arith.constant 0 : index
      %50 = vector.load %arg8[%c0_26, %c0_27] : memref<8x1xf32, #tpu.memory_space<vmem>>, vector<8x1xf32>
      %51 = arith.addf %50, %49 : vector<8x1xf32>
      %c0_28 = arith.constant 0 : index
      %c0_29 = arith.constant 0 : index
      %52 = vector.load %arg8[%c0_28, %c0_29] : memref<8x1xf32, #tpu.memory_space<vmem>>, vector<8x1xf32>
      tpu.vector_store %arg8[%c0_28, %c0_29], %51 {strides = array<i32>} : memref<8x1xf32, #tpu.memory_space<vmem>>, vector<8x1xf32>,
    } else {
    }
    %c0_i32_14 = arith.constant 0 : i32
    %22 = arith.cmpi eq, %arg1, %c0_i32_14 : i32
    %c0_i32_15 = arith.constant 0 : i32
    %23 = arith.cmpi eq, %arg2, %c0_i32_15 : i32
    %24 = arith.andi %22, %23 : i1
    %25 = arith.extui %24 : i1 to i32
    %c0_i32_16 = arith.constant 0 : i32
    %26 = arith.cmpi ne, %25, %c0_i32_16 : i32
    scf.if %26 {
      %c0_17 = arith.constant 0 : index
      %c0_18 = arith.constant 0 : index
      %27 = vector.load %arg8[%c0_17, %c0_18] : memref<8x1xf32, #tpu.memory_space<vmem>>, vector<8x1xf32>
      %28 = vector.shape_cast %27 : vector<8x1xf32> to vector<1x8x1xf32>
      %cst_19 = arith.constant dense<0.000000e+00> : vector<1xf32>
      %29 = vector.multi_reduction <add>, %28, %cst_19 [1, 2] : vector<1x8x1xf32> to vector<1xf32>
      %30 = vector.shape_cast %29 : vector<1xf32> to vector<1x1x1xf32>
      %31 = vector.extract %30[0, 0, 0] : f32 from vector<1x1x1xf32>
      %32 = vector.broadcast %31 : f32 to vector<1x1x1xf32>
      %c0_20 = arith.constant 0 : index
      %c0_21 = arith.constant 0 : index
      %c0_22 = arith.constant 0 : index
      %33 = vector.load %arg6[%c0_20, %c0_21, %c0_22] : memref<1x1x1xf32, #tpu.memory_space<vmem>>, vector<1x1x1xf32>
      tpu.vector_store %arg6[%c0_20, %c0_21, %c0_22], %32 {strides = array<i32>} : memref<1x1x1xf32, #tpu.memory_space<vmem>>, vector<1x1x1xf32>,
    } else {
    }
    return
  }
  func.func @transform_0(%arg0: i32, %arg1: i32, %arg2: i32) -> (i32, i32) {
    %c1_i32 = arith.constant 1 : i32
    %0 = arith.muli %arg0, %c1_i32 : i32
    %1 = arith.addi %0, %arg1 : i32
    %c0_i32 = arith.constant 0 : i32
    %2 = arith.minsi %1, %c0_i32 : i32
    %c0_i32_0 = arith.constant 0 : i32
    return %2, %arg2 : i32, i32
  }
  func.func @transform_1(%arg0: i32, %arg1: i32, %arg2: i32) -> (i32, i32) {
    %c1_i32 = arith.constant 1 : i32
    %0 = arith.muli %arg0, %c1_i32 : i32
    %1 = arith.addi %0, %arg1 : i32
    %c0_i32 = arith.constant 0 : i32
    %2 = arith.minsi %1, %c0_i32 : i32
    %c0_i32_0 = arith.constant 0 : i32
    return %2, %arg2 : i32, i32
  }
  func.func @transform_2(%arg0: i32, %arg1: i32, %arg2: i32) -> (i32, i32) {
    %c1_i32 = arith.constant 1 : i32
    %0 = arith.muli %arg0, %c1_i32 : i32
    %1 = arith.addi %0, %arg1 : i32
    %c0_i32 = arith.constant 0 : i32
    %2 = arith.minsi %1, %c0_i32 : i32
    %c0_i32_0 = arith.constant 0 : i32
    %c0_i32_1 = arith.constant 0 : i32
    return %2, %c0_i32_0 : i32, i32
  }
  func.func @transform_3(%arg0: i32, %arg1: i32, %arg2: i32) -> (i32, i32, i32) {
    %c0_i32 = arith.constant 0 : i32
    %c0_i32_0 = arith.constant 0 : i32
    %c0_i32_1 = arith.constant 0 : i32
    return %arg0, %c0_i32, %c0_i32_0 : i32, i32, i32
  }
}

</mosaic_0001>

<llo_original>
// kernel: tpu_custom_call.1
$region0: #{tpu_custom_call.1}
  #allocation0 [shape = 'u32[]', space=smem, size = 0x4, offset = 0x4, fixed_abs, tag = 'smem constant byte address 0x4 - core index']
  #allocation1 [shape = 'u32[144,128]{1,0:T(1,128)}', space=vmem, size = 0x12000, scoped, tag = 'internal scratch']
  #allocation2 [shape = 'f32[8,1]{1,0:T(8,128)}', space=vmem, size = 0x1000, scoped, tag = 'scratch operand']
  #allocation3 [shape = 'f32[8,1]{1,0:T(8,128)}', space=vmem, size = 0x1000, scoped, tag = 'scratch operand']
  %s0 = inlined_call_operand.hbm [shape: f32[8,32], index: 0, kind: input, shape index: {}]
  %s1 = inlined_call_operand.hbm [shape: f32[8,32], index: 1, kind: input, shape index: {}]
  %s2 = inlined_call_operand.hbm [shape: f32[8,1], index: 2, kind: input, shape index: {}]
  %s3 = inlined_call_operand.hbm [shape: f32[1,1,1], index: 3, kind: output, shape index: {}]
  %s4 = sld [smem:[#allocation0]]
  $region50: #{tpu_custom_call.1} parent=0
    _
  %s6 = ssub.s32 1, %s4
  %s7 = scalar_select 0, %s6, %s4
  $region1: #{tpu_custom_call.1} parent=0
    #allocation4 [shape = 'u8[4096]{0}', space=vmem, size = 0x1000, scoped, tag = 'input window, operand 0, single buffered']
    #allocation5 [shape = 's32[1]{0}', space=sflag, size = 0x4, scoped, tag = 'scoped memory for tpu_custom_call.1']
    #allocation6 [shape = 's32[1]{0}', space=sflag, size = 0x4, scoped, tag = 'scoped memory for tpu_custom_call.1']
    #allocation7 [shape = 'u8[4096]{0}', space=vmem, size = 0x1000, scoped, tag = 'input window, operand 1, single buffered']
    #allocation8 [shape = 's32[1]{0}', space=sflag, size = 0x4, scoped, tag = 'scoped memory for tpu_custom_call.1']
    #allocation9 [shape = 'u8[4096]{0}', space=vmem, size = 0x1000, scoped, tag = 'input window, operand 2, single buffered']
    #allocation10 [shape = 'u8[512]{0}', space=vmem, size = 0x400, scoped, tag = 'output window, operand 0, single buffered']
    %8 = vsyncpa [#allocation5], 0
    %9 = vsyncpa [#allocation8], 0
    %10 = vsyncpa [#allocation6], 0
    // Predicated region
    $region2: #{tpu_custom_call.1} parent=1 // pred_check
      _
    $region3: #{tpu_custom_call.1} parent=1 // pred_check_branch
      %12 = sbr.rel (0) target = $region5
    $region4: #{tpu_custom_call.1} parent=1 // pred_region
      %s13 = sadd.s32 0, 0
      %p14 = scmp.lt.s32.totalorder %s13, 0
      %s15 = scalar_select %p14, %s13, 0
      %s17 = ssub.s32 128, 128
      %18 = vsyncadd [#allocation5], %s17
      %s19 = smul.addr %s15, 128
      %s20 = scalar_lea.hbm %s0, %s19
      %s22 = sshll.u32 [#allocation4], 4
      %s23 = int_to_ptr.vmem [resolvable:$true] %s22
      %25 = dma.hbm_to_vmem [thread:$0]  %s20, 128, %s23, [#allocation5]
    $region5: #{tpu_custom_call.1} parent=1 // pred_fallthru
      _
    // Predicated region
    $region6: #{tpu_custom_call.1} parent=1 // pred_check
      _
    $region7: #{tpu_custom_call.1} parent=1 // pred_check_branch
      %27 = sbr.rel (0) target = $region9
    $region8: #{tpu_custom_call.1} parent=1 // pred_region
      %s28 = sadd.s32 0, 0
      %p29 = scmp.lt.s32.totalorder %s28, 0
      %s30 = scalar_select %p29, %s28, 0
      %s32 = ssub.s32 128, 128
      %33 = vsyncadd [#allocation8], %s32
      %s34 = smul.addr %s30, 128
      %s35 = scalar_lea.hbm %s1, %s34
      %s37 = sshll.u32 [#allocation7], 4
      %s38 = int_to_ptr.vmem [resolvable:$true] %s37
      %40 = dma.hbm_to_vmem [thread:$0]  %s35, 128, %s38, [#allocation8]
    $region9: #{tpu_custom_call.1} parent=1 // pred_fallthru
      _
    // Predicated region
    $region10: #{tpu_custom_call.1} parent=1 // pred_check
      _
    $region11: #{tpu_custom_call.1} parent=1 // pred_check_branch
      %42 = sbr.rel (0) target = $region13
    $region12: #{tpu_custom_call.1} parent=1 // pred_region
      %s43 = sadd.s32 0, 0
      %p44 = scmp.lt.s32.totalorder %s43, 0
      %s45 = scalar_select %p44, %s43, 0
      %s47 = ssub.s32 128, 128
      %48 = vsyncadd [#allocation8], %s47
      %s49 = smul.addr %s45, 128
      %s50 = scalar_lea.hbm %s2, %s49
      %s52 = sshll.u32 [#allocation9], 4
      %s53 = int_to_ptr.vmem [resolvable:$true] %s52
      %55 = dma.hbm_to_vmem [thread:$0]  %s50, 128, %s53, [#allocation8]
    $region13: #{tpu_custom_call.1} parent=1 // pred_fallthru
      _
    // Predicated region
    $region14: #{tpu_custom_call.1} parent=1 // pred_check
      _
    $region15: #{tpu_custom_call.1} parent=1 // pred_check_branch
      %57 = sbr.rel (0) target = $region17
    $region16: #{tpu_custom_call.1} parent=1 // pred_region
      %58 = dma.done [#allocation5], 128
    $region17: #{tpu_custom_call.1} parent=1 // pred_fallthru
      _
    // Predicated region
    $region18: #{tpu_custom_call.1} parent=1 // pred_check
      _
    $region19: #{tpu_custom_call.1} parent=1 // pred_check_branch
      %60 = sbr.rel (0) target = $region21
    $region20: #{tpu_custom_call.1} parent=1 // pred_region
      %61 = dma.done [#allocation8], 128
    $region21: #{tpu_custom_call.1} parent=1 // pred_fallthru
      _
    // Predicated region
    $region22: #{tpu_custom_call.1} parent=1 // pred_check
      _
    $region23: #{tpu_custom_call.1} parent=1 // pred_check_branch
      %63 = sbr.rel (0) target = $region25
    $region24: #{tpu_custom_call.1} parent=1 // pred_region
      %64 = dma.done [#allocation8], 128
    $region25: #{tpu_custom_call.1} parent=1 // pred_fallthru
      _
    %s65 = sadd.s32 0, 0
    %p66 = scmp.lt.s32.totalorder %s65, 0
    %s67 = scalar_select %p66, %s65, 0
    %s68 = sadd.s32 0, 0
    %p69 = scmp.lt.s32.totalorder %s68, 0
    %s70 = scalar_select %p69, %s68, 0
    %s71 = sadd.s32 0, 0
    %p72 = scmp.lt.s32.totalorder %s71, 0
    %s73 = scalar_select %p72, %s71, 0
    %p74 = scmp.eq.s32.totalorder 0, 0
    %p75 = scmp.eq.s32.totalorder 0, 0
    %p76 = pnand %p74, %p75
    %p77 = pneg %p76
    // Predicated region
    $region26: #{tpu_custom_call.1} parent=1 // pred_check
      _
    $region27: #{tpu_custom_call.1} parent=1 // pred_check_branch
      %79 = sbr.rel (%p76) target = $region29
    $region28: #{tpu_custom_call.1} parent=1 // pred_region
      %vm80 = vcmask 7168
      %81 = vst.msk [vmem:[#allocation3] sm:$0xff] %vm80, 0.0
    $region29: #{tpu_custom_call.1} parent=1 // pred_fallthru
      _
    // Predicated region
    $region30: #{tpu_custom_call.1} parent=1 // pred_check
      %p82 = pneg %p75
    $region31: #{tpu_custom_call.1} parent=1 // pred_check_branch
      %84 = sbr.rel (%p82) target = $region33
    $region32: #{tpu_custom_call.1} parent=1 // pred_region
      %vm85 = vcmask 7168
      %86 = vst.msk [vmem:[#allocation2] sm:$0xff] %vm85, 0.0
    $region33: #{tpu_custom_call.1} parent=1 // pred_fallthru
      _
    %v87 = vld [vmem:[#allocation4] sm:$0xff]
    %v88 = vld [vmem:[#allocation7] sm:$0xff]
    %v89 = vsub.f32 %v87, %v88
    %v90 = vadd.f32 %v89, 1e-06
    %v91 = vmul.f32 %v90, %v90
    %v92 = vld [vmem:[#allocation2] sm:$0xff]
    %vm93 = vcmask 261120
    %v94 = vsel %vm93, %v91, 0.0
    %95 = vadd.xlane.f32.xlu0 %v94
    %v96 = vpop.xlane.xlu0 %95
    %v97 = vadd.f32 %v92, %v96
    %vm98 = vcmask 7168
    %99 = vst.msk [vmem:[#allocation2] sm:$0xff] %vm98, %v97
    // Predicated region
    $region34: #{tpu_custom_call.1} parent=1 // pred_check
      %p100 = pneg %p75
    $region35: #{tpu_custom_call.1} parent=1 // pred_check_branch
      %102 = sbr.rel (%p100) target = $region37
    $region36: #{tpu_custom_call.1} parent=1 // pred_region
      %v103 = vld [vmem:[#allocation9] sm:$0xff]
      %v104 = vld [vmem:[#allocation2] sm:$0xff]
      %v105 = vrsqrt.pop %v104
      %v106 = vmul.f32 %v104, %v105
      %vm107 = vcmp.eq.f32.partialorder %v104, inf
      %v108 = vsel %vm107, %v104, %v106
      %vm109 = vcmp.eq.f32.partialorder %v104, 0.0
      %v110 = vand.u32 %v104, 2147483648
      %v111 = vsel %vm109, %v110, %v108
      %v112 = vsub.f32 1.0, %v111
      %v113 = vmax.f32 %v112, 0.0
      %v114 = vmul.f32 %v103, %v104
      %v115 = vsub.f32 1.0, %v103
      %v116 = vmul.f32 %v113, %v113
      %v117 = vmul.f32 %v115, %v116
      %v118 = vadd.f32 %v114, %v117
      %s119 = sadd.s32 0, 0
      %s120 = smul.u32 %s119, 8
      %v121 = vlaneseq
      %v122 = vshrl.u32 %v121, 7
      %v123 = vstv %s120
      %v124 = vadd.s32 %v123, %v122
      %vm125 = vcmp.lt.s32.totalorder %v124, 8
      %v126 = vsel %vm125, %v118, 0.0
      %v127 = vld [vmem:[#allocation3] sm:$0xff]
      %v128 = vadd.f32 %v127, %v126
      %129 = vst.msk [vmem:[#allocation3] sm:$0xff] %vm98, %v128
    $region37: #{tpu_custom_call.1} parent=1 // pred_fallthru
      _
    // Predicated region
    $region38: #{tpu_custom_call.1} parent=1 // pred_check
      _
    $region39: #{tpu_custom_call.1} parent=1 // pred_check_branch
      %131 = sbr.rel (%p76) target = $region41
    $region40: #{tpu_custom_call.1} parent=1 // pred_region
      %v132 = vld [vmem:[#allocation3] sm:$0xff]
      %v133 = vsel %vm98, %v132, 0.0
      %134 = vadd.xlane.f32.xlu0 %v133
      %v135 = vpop.xlane.xlu0 %134
      %v136 = vrot.slane %v135, 4
      %v137 = vadd.f32 %v135, %v136
      %v138 = vrot.slane %v137, 2
      %v139 = vadd.f32 %v137, %v138
      %v140 = vrot.slane %v139, 1
      %v141 = vadd.f32 %v139, %v140
      %s142 = vtos %v141
      %v143 = vstv %s142
      %vm144 = vcmask 0
      %145 = vst.msk [vmem:[#allocation10] sm:$0x1] %vm144, %v143
    $region41: #{tpu_custom_call.1} parent=1 // pred_fallthru
      _
    // Predicated region
    $region42: #{tpu_custom_call.1} parent=1 // pred_check
      _
    $region43: #{tpu_custom_call.1} parent=1 // pred_check_branch
      %147 = sbr.rel (0) target = $region45
    $region44: #{tpu_custom_call.1} parent=1 // pred_region
      %s149 = ssub.s32 16, 16
      %150 = vsyncadd [#allocation6], %s149
      %s152 = sshll.u32 [#allocation10], 4
      %s153 = int_to_ptr.vmem [resolvable:$true] %s152
      %155 = dma.vmem_to_hbm [thread:$0]  %s153, 16, %s3, [#allocation6]
    $region45: #{tpu_custom_call.1} parent=1 // pred_fallthru
      _
    // Predicated region
    $region46: #{tpu_custom_call.1} parent=1 // pred_check
      _
    $region47: #{tpu_custom_call.1} parent=1 // pred_check_branch
      %157 = sbr.rel (0) target = $region49
    $region48: #{tpu_custom_call.1} parent=1 // pred_region
      %158 = dma.done [#allocation6], 16
    $region49: #{tpu_custom_call.1} parent=1 // pred_fallthru
      _
    %159 = vsyncpa [#allocation5], 1
    %160 = vsyncpa [#allocation8], 1
    %161 = vsyncpa [#allocation6], 1

</llo_original>
